<compile_context>
chip_gen: v6e
topology: v6e:2x2x1
jax: 0.10.0
libtpu: 0.0.40
codegen_flags: <defaults>
</compile_context>

<pallas_src>
import functools

import jax
import jax.numpy as jnp
from jax.experimental import pallas as pl
from jax.experimental.pallas import tpu as pltpu


def _round_up(v, m):
    return ((v + m - 1) // m) * m


def _vmem_capacity_bytes():
    try:
        return int(pltpu.get_tpu_info().vmem_capacity_bytes)
    except Exception:
        return 64 * 1024 * 1024  # conservative: v7x per-TensorCore VMEM


# ---------------------------------------------------------------------------
# Main kernel: one tile of instance rows, full spatial extent per row.
# ---------------------------------------------------------------------------
def _instance_norm_kernel(x_ref, o_ref, *, eps, inv_hw):
    # x_ref / o_ref: (TM, HW) -- each row is one (n, c) instance.
    x = x_ref[...].astype(jnp.float32)
    s = jnp.sum(x, axis=-1, keepdims=True)            # XLU reduce
    ss = jnp.sum(x * x, axis=-1, keepdims=True)       # XLU reduce
    mean = s * inv_hw
    var = jnp.maximum(ss * inv_hw - mean * mean, 0.0)  # guard cancellation
    inv_std = jax.lax.rsqrt(var + eps)                 # EUP rsqrt
    # Re-read x from VMEM (cheap vld) instead of keeping a second full-block
    # f32 temporary live across both reductions.
    o_ref[...] = ((x_ref[...].astype(jnp.float32) - mean) * inv_std).astype(o_ref.dtype)


# ---------------------------------------------------------------------------
# Fallback kernel for very large H*W: column-tiled, two passes over hw tiles.
# Pass 0 accumulates per-row sum / sumsq in VMEM scratch; pass 1 normalizes.
# ---------------------------------------------------------------------------
def _instance_norm_col_kernel(x_ref, o_ref, sum_ref, ssq_ref, *, eps, inv_hw, hw, thw):
    p = pl.program_id(1)
    j = pl.program_id(2)

    @pl.when(jnp.logical_and(p == 0, j == 0))
    def _():
        sum_ref[...] = jnp.zeros_like(sum_ref)
        ssq_ref[...] = jnp.zeros_like(ssq_ref)

    @pl.when(p == 0)
    def _():
        lane = jax.lax.broadcasted_iota(jnp.int32, x_ref.shape, 1)
        mask = (j * thw + lane) < hw  # zero out the ragged lane tail
        xv = jnp.where(mask, x_ref[...].astype(jnp.float32), 0.0)
        sum_ref[...] = sum_ref[...] + jnp.sum(xv, axis=-1, keepdims=True)
        ssq_ref[...] = ssq_ref[...] + jnp.sum(xv * xv, axis=-1, keepdims=True)

    @pl.when(p == 1)
    def _():
        mean = sum_ref[...] * inv_hw
        var = jnp.maximum(ssq_ref[...] * inv_hw - mean * mean, 0.0)
        inv_std = jax.lax.rsqrt(var + eps)
        o_ref[...] = ((x_ref[...].astype(jnp.float32) - mean) * inv_std).astype(o_ref.dtype)


def instance_norm_pallas(x, epsilon=1e-8):
    """x: [N, C, H, W] (NCHW, like PyTorch). Returns same shape/dtype."""
    N, C, H, W = x.shape
    rows = N * C
    hw = H * W

    # Contiguous reshape only (H, W already innermost) -- no transpose/copy.
    x2 = x.reshape(rows, hw)

    itemsize = jnp.dtype(x.dtype).itemsize
    sub = {4: 8, 2: 16, 1: 32}.get(itemsize, 8)  # dtype-aware sublane rounding

    vmem_cap = _vmem_capacity_bytes()
    vmem_limit = int(vmem_cap * 0.7)      # scoped VMEM we ask the compiler for
    tile_budget = int(vmem_limit * 0.8)   # bytes for pipeline buffers + f32 temps

    # Per-row footprint: 2 double-buffered copies of (in + out) in the input
    # dtype plus ~2 f32 full-block temporaries inside the kernel.
    per_row_bytes = hw * (4 * itemsize + 8)

    if per_row_bytes * sub <= tile_budget:
        # ---------------- full-row (single-pass) path ----------------
        tm_cap = (tile_budget // per_row_bytes) // sub * sub
        # Keep each pipeline buffer in the measured sweet spot (<= ~8 MiB).
        buf_cap = max(sub, (8 * 1024 * 1024 // max(hw * itemsize, 1)) // sub * sub)
        tm_cap = max(sub, min(tm_cap, buf_cap, _round_up(rows, sub)))
        # v7x: make sure there are >= 2 grid steps so both TensorCores get work.
        if tm_cap >= rows and rows >= 2 * sub:
            tm_cap = _round_up(-(-rows // 2), sub)

        # Prefer a divisor of rows (no ragged tail block), but only if it is
        # at least half the cap; otherwise accept one masked tail block.
        tm = tm_cap
        for t in range(tm_cap, max(sub, tm_cap // 2) - 1, -sub):
            if rows % t == 0:
                tm = t
                break

        grid = (pl.cdiv(rows, tm),)
        kernel = functools.partial(
            _instance_norm_kernel, eps=float(epsilon), inv_hw=1.0 / float(hw))
        # TODO(synk): if hw % 128 != 0 loads/stores are masked partial-vreg ops;
        # a lane-padded layout would be faster but needs an extra HBM copy.
        out = pl.pallas_call(
            kernel,
            out_shape=jax.ShapeDtypeStruct((rows, hw), x.dtype),
            grid_spec=pltpu.PrefetchScalarGridSpec(
                num_scalar_prefetch=0,
                grid=grid,
                in_specs=[pl.BlockSpec((tm, hw), lambda i: (i, 0))],
                out_specs=pl.BlockSpec((tm, hw), lambda i: (i, 0)),
            ),
            compiler_params=pltpu.CompilerParams(
                dimension_semantics=("parallel",),
                vmem_limit_bytes=vmem_limit),
        )(x2)
    else:
        # ---------------- column-tiled two-pass fallback ----------------
        tm = min(_round_up(rows, sub), 8 * sub)
        per_col_bytes = tm * (4 * itemsize + 8)
        thw = max(128, (tile_budget // per_col_bytes) // 128 * 128)
        thw = min(thw, _round_up(hw, 128))
        grid = (pl.cdiv(rows, tm), 2, pl.cdiv(hw, thw))
        kernel = functools.partial(
            _instance_norm_col_kernel, eps=float(epsilon),
            inv_hw=1.0 / float(hw), hw=hw, thw=thw)
        out = pl.pallas_call(
            kernel,
            out_shape=jax.ShapeDtypeStruct((rows, hw), x.dtype),
            grid_spec=pltpu.PrefetchScalarGridSpec(
                num_scalar_prefetch=0,
                grid=grid,
                in_specs=[pl.BlockSpec((tm, thw), lambda i, p, j: (i, j))],
                # During the stats pass (p==0) the output block index stays
                # pinned at (i, 0); it is only swept (and written) on p==1,
                # so every output block is written exactly once.
                out_specs=pl.BlockSpec((tm, thw), lambda i, p, j: (i, j * p)),
                scratch_shapes=[pltpu.VMEM((tm, 1), jnp.float32),
                                pltpu.VMEM((tm, 1), jnp.float32)],
            ),
            compiler_params=pltpu.CompilerParams(
                dimension_semantics=("parallel", "arbitrary", "arbitrary"),
                vmem_limit_bytes=vmem_limit),
        )(x2)

    return out.reshape(N, C, H, W)


# ---------------------------------------------------------------------------
# Module replica (forward only), mirroring the PyTorch InstanceNorm.
# ---------------------------------------------------------------------------
class InstanceNormPallas:
    def __init__(self, epsilon=1e-8):
        self.epsilon = epsilon

    def __call__(self, x):
        return instance_norm_pallas(x, self.epsilon)


# ---------------------------------------------------------------------------
# Reference (pure JAX) for correctness check.
# ---------------------------------------------------------------------------
def _reference_instance_norm(x, epsilon=1e-8):
    x32 = x.astype(jnp.float32)
    xc = x32 - jnp.mean(x32, axis=(2, 3), keepdims=True)
    inv = jax.lax.rsqrt(jnp.mean(xc * xc, axis=(2, 3), keepdims=True) + epsilon)
    return (xc * inv).astype(x.dtype)


if __name__ == "__main__":
    key = jax.random.PRNGKey(0)

    N, C, H, W = 2, 4, 16, 16
    x = jax.random.normal(key, (N, C, H, W), dtype=jnp.float32)

    norm = InstanceNormPallas(epsilon=1e-8)
    out = norm(x)
    out = jax.block_until_ready(out)

    ref = _reference_instance_norm(x, 1e-8)
    assert out.shape == (N, C, H, W)
    assert out.dtype == x.dtype
    assert jnp.allclose(out, ref, atol=1e-5, rtol=1e-5), "mismatch vs reference"

    print("KERNEL_OK")
</pallas_src>

<mosaic_0001>
module attributes {stable_mosaic.version = 11 : i64} {
  func.func @_instance_norm_kernel(%arg0: i32, %arg1: memref<8x256xf32, #tpu.memory_space<vmem>>, %arg2: memref<8x256xf32, #tpu.memory_space<vmem>>) attributes {dimension_semantics = [#tpu.dimension_semantics<parallel>], iteration_bounds = array<i64: 1>, scalar_prefetch = 0 : i64, scratch_operands = 0 : i64, tpu.core_type = #tpu.core_type<tc>, window_params = [{transform_indices = @transform_0, window_bounds = array<i64: 8, 256>}, {transform_indices = @transform_1, window_bounds = array<i64: 8, 256>}]} {
    %c0 = arith.constant 0 : index
    %c0_0 = arith.constant 0 : index
    %0 = vector.load %arg1[%c0, %c0_0] : memref<8x256xf32, #tpu.memory_space<vmem>>, vector<8x256xf32>
    %cst = arith.constant dense<0.000000e+00> : vector<8xf32>
    %1 = vector.multi_reduction <add>, %0, %cst [1] : vector<8x256xf32> to vector<8xf32>
    %2 = vector.shape_cast %1 : vector<8xf32> to vector<8x1xf32>
    %3 = arith.mulf %0, %0 : vector<8x256xf32>
    %cst_1 = arith.constant dense<0.000000e+00> : vector<8xf32>
    %4 = vector.multi_reduction <add>, %3, %cst_1 [1] : vector<8x256xf32> to vector<8xf32>
    %5 = vector.shape_cast %4 : vector<8xf32> to vector<8x1xf32>
    %cst_2 = arith.constant 3.906250e-03 : f32
    %6 = vector.broadcast %cst_2 : f32 to vector<8x1xf32>
    %7 = arith.mulf %2, %6 : vector<8x1xf32>
    %cst_3 = arith.constant 3.906250e-03 : f32
    %8 = vector.broadcast %cst_3 : f32 to vector<8x1xf32>
    %9 = arith.mulf %5, %8 : vector<8x1xf32>
    %10 = arith.mulf %7, %7 : vector<8x1xf32>
    %11 = arith.subf %9, %10 : vector<8x1xf32>
    %cst_4 = arith.constant 0.000000e+00 : f32
    %12 = vector.broadcast %cst_4 : f32 to vector<8x1xf32>
    %13 = arith.maximumf %11, %12 : vector<8x1xf32>
    %cst_5 = arith.constant 9.99999993E-9 : f32
    %14 = vector.broadcast %cst_5 : f32 to vector<8x1xf32>
    %15 = arith.addf %13, %14 : vector<8x1xf32>
    %16 = math.rsqrt %15 : vector<8x1xf32>
    %c0_6 = arith.constant 0 : index
    %c0_7 = arith.constant 0 : index
    %17 = vector.load %arg1[%c0_6, %c0_7] : memref<8x256xf32, #tpu.memory_space<vmem>>, vector<8x256xf32>
    %18 = vector.broadcast %7 : vector<8x1xf32> to vector<8x256xf32>
    %19 = arith.subf %17, %18 : vector<8x256xf32>
    %20 = vector.broadcast %16 : vector<8x1xf32> to vector<8x256xf32>
    %21 = arith.mulf %19, %20 : vector<8x256xf32>
    %c0_8 = arith.constant 0 : index
    %c0_9 = arith.constant 0 : index
    %22 = vector.load %arg2[%c0_8, %c0_9] : memref<8x256xf32, #tpu.memory_space<vmem>>, vector<8x256xf32>
    tpu.vector_store %arg2[%c0_8, %c0_9], %21 {strides = array<i32>} : memref<8x256xf32, #tpu.memory_space<vmem>>, vector<8x256xf32>,
    return
  }
  func.func @transform_0(%arg0: i32) -> (i32, i32) {
    %c0_i32 = arith.constant 0 : i32
    %c0_i32_0 = arith.constant 0 : i32
    return %arg0, %c0_i32 : i32, i32
  }
  func.func @transform_1(%arg0: i32) -> (i32, i32) {
    %c0_i32 = arith.constant 0 : i32
    %c0_i32_0 = arith.constant 0 : i32
    return %arg0, %c0_i32 : i32, i32
  }
}

</mosaic_0001>

<llo_original>
// kernel: tpu_custom_call.1
$region0: #{tpu_custom_call.1}
  #allocation0 [shape = 'u32[]', space=smem, size = 0x4, offset = 0x4, fixed_abs, tag = 'smem constant byte address 0x4 - core index']
  #allocation1 [shape = 'u32[144,128]{1,0:T(1,128)}', space=vmem, size = 0x12000, scoped, tag = 'internal scratch']
  %s0 = inlined_call_operand.hbm [shape: f32[8,256], index: 0, kind: input, shape index: {}]
  %s1 = inlined_call_operand.hbm [shape: f32[8,256], index: 1, kind: output, shape index: {}]
  %s2 = sld [smem:[#allocation0]]
  $region18: #{tpu_custom_call.1} parent=0
    _
  %s4 = ssub.s32 1, %s2
  %s5 = scalar_select 0, %s4, %s2
  $region1: #{tpu_custom_call.1} parent=0
    #allocation2 [shape = 'u8[8192]{0}', space=vmem, size = 0x2000, scoped, tag = 'input window, operand 0, single buffered']
    #allocation3 [shape = 's32[1]{0}', space=sflag, size = 0x4, scoped, tag = 'scoped memory for tpu_custom_call.1']
    #allocation4 [shape = 's32[1]{0}', space=sflag, size = 0x4, scoped, tag = 'scoped memory for tpu_custom_call.1']
    #allocation5 [shape = 'u8[8192]{0}', space=vmem, size = 0x2000, scoped, tag = 'output window, operand 0, single buffered']
    %6 = vsyncpa [#allocation3], 0
    %7 = vsyncpa [#allocation4], 0
    // Predicated region
    $region2: #{tpu_custom_call.1} parent=1 // pred_check
      _
    $region3: #{tpu_custom_call.1} parent=1 // pred_check_branch
      %9 = sbr.rel (0) target = $region5
    $region4: #{tpu_custom_call.1} parent=1 // pred_region
      %s11 = ssub.s32 256, 256
      %12 = vsyncadd [#allocation3], %s11
      %s14 = sshll.u32 [#allocation2], 4
      %s15 = int_to_ptr.vmem [resolvable:$true] %s14
      %17 = dma.hbm_to_vmem [thread:$0]  %s0, 256, %s15, [#allocation3]
    $region5: #{tpu_custom_call.1} parent=1 // pred_fallthru
      _
    // Predicated region
    $region6: #{tpu_custom_call.1} parent=1 // pred_check
      _
    $region7: #{tpu_custom_call.1} parent=1 // pred_check_branch
      %19 = sbr.rel (0) target = $region9
    $region8: #{tpu_custom_call.1} parent=1 // pred_region
      %20 = dma.done [#allocation3], 256
    $region9: #{tpu_custom_call.1} parent=1 // pred_fallthru
      _
    %v21 = vld [vmem:[#allocation2] sm:$0xff]
    %v22 = vld [vmem:[#allocation2 + $0x8] sm:$0xff]
    %v23 = vadd.f32 %v21, %v22
    %24 = vadd.xlane.f32.xlu0 %v23
    %v25 = vpop.xlane.xlu0 %24
    %v26 = vmul.f32 %v21, %v21
    %v27 = vmul.f32 %v22, %v22
    %v28 = vadd.f32 %v26, %v27
    %29 = vadd.xlane.f32.xlu0 %v28
    %v30 = vpop.xlane.xlu0 %29
    %v31 = vmul.f32 %v25, 0.00390625
    %v32 = vmul.f32 %v30, 0.00390625
    %v33 = vmul.f32 %v31, %v31
    %v34 = vsub.f32 %v32, %v33
    %v35 = vmax.f32 %v34, 0.0
    %v36 = vadd.f32 %v35, 1e-08
    %v37 = vrsqrt.pop %v36
    %v38 = vsub.f32 %v21, %v31
    %v39 = vsub.f32 %v22, %v31
    %v40 = vmul.f32 %v38, %v37
    %v41 = vmul.f32 %v39, %v37
    %42 = vst [vmem:[#allocation5] sm:$0xff] %v40
    %43 = vst [vmem:[#allocation5 + $0x8] sm:$0xff] %v41
    // Predicated region
    $region10: #{tpu_custom_call.1} parent=1 // pred_check
      _
    $region11: #{tpu_custom_call.1} parent=1 // pred_check_branch
      %45 = sbr.rel (0) target = $region13
    $region12: #{tpu_custom_call.1} parent=1 // pred_region
      %s47 = ssub.s32 256, 256
      %48 = vsyncadd [#allocation4], %s47
      %s50 = sshll.u32 [#allocation5], 4
      %s51 = int_to_ptr.vmem [resolvable:$true] %s50
      %53 = dma.vmem_to_hbm [thread:$0]  %s51, 256, %s1, [#allocation4]
    $region13: #{tpu_custom_call.1} parent=1 // pred_fallthru
      _
    // Predicated region
    $region14: #{tpu_custom_call.1} parent=1 // pred_check
      _
    $region15: #{tpu_custom_call.1} parent=1 // pred_check_branch
      %55 = sbr.rel (0) target = $region17
    $region16: #{tpu_custom_call.1} parent=1 // pred_region
      %56 = dma.done [#allocation4], 256
    $region17: #{tpu_custom_call.1} parent=1 // pred_fallthru
      _
    %57 = vsyncpa [#allocation3], 1
    %58 = vsyncpa [#allocation4], 1

</llo_original>
